<compile_context>
chip_gen: v6e
topology: v6e:2x2x1
jax: 0.10.0
libtpu: 0.0.40
codegen_flags: <defaults>
</compile_context>

<pallas_src>
import jax
import jax.numpy as jnp
from jax import lax
from jax.experimental import pallas as pl
from jax.experimental.pallas import tpu as pltpu

_LANE = 128          # vreg lane width
_SUBLANE_BF16 = 16   # bf16 sublane packing granularity (2nd-to-last dim)
_MiB = 1024 * 1024


def _round_up(x: int, m: int) -> int:
    return ((x + m - 1) // m) * m


# --------------------------- kernels ---------------------------------------

def _linear_kernel(x_ref, w_ref, o_ref):
    # x_ref: (tm, K) bf16, w_ref: (tn, K) bf16 (PyTorch weight layout),
    # o_ref: (tm, tn).  Contract last dims (== X @ W^T), f32 accumulation.
    o_ref[...] = lax.dot_general(
        x_ref[...], w_ref[...],
        dimension_numbers=(((1,), (1,)), ((), ())),
        preferred_element_type=jnp.float32,
    ).astype(o_ref.dtype)


def _linear_kernel_ktiled(x_ref, w_ref, o_ref, acc_ref):
    # Same contraction, but with a K-reduction grid axis (last grid axis) and
    # a VMEM f32 accumulator resident across the K steps of one output tile.
    k = pl.program_id(2)

    @pl.when(k == 0)
    def _():
        acc_ref[...] = jnp.zeros_like(acc_ref)

    acc_ref[...] += lax.dot_general(
        x_ref[...], w_ref[...],
        dimension_numbers=(((1,), (1,)), ((), ())),
        preferred_element_type=jnp.float32,
    )

    @pl.when(k == pl.num_programs(2) - 1)
    def _():
        o_ref[...] = acc_ref[...].astype(o_ref.dtype)


# --------------------------- wrapper ----------------------------------------

def linear_embedding(x: jax.Array, weight: jax.Array, *,
                     tm_pref: int = 512, tn_pref: int = 512) -> jax.Array:
    """Y = x @ weight.T over the last axis of x (nn.Linear, bias=False).

    x      : (..., n_features)
    weight : (d_embedding, n_features)    -- PyTorch nn.Linear layout
    returns: (..., d_embedding), dtype of x
    """
    K = x.shape[-1]
    N = weight.shape[0]
    assert weight.shape[1] == K, "weight must be (d_embedding, n_features)"

    lead = x.shape[:-1]
    out_dtype = x.dtype
    out_isz = jnp.dtype(out_dtype).itemsize

    x2d = x.reshape(-1, K)
    M = x2d.shape[0]

    # ---- generation-aware VMEM budget --------------------------------------
    try:
        vmem_cap = int(pltpu.get_tpu_info().vmem_capacity_bytes)
    except Exception:
        vmem_cap = 64 * _MiB  # conservative fallback (v7x per-TC VMEM)
    # Per-step double-buffered footprint target: ~32 MiB on v7x (64 MiB
    # physical), 48 MiB on v5e/v6e (128 MiB physical). Leaves headroom for
    # Mosaic internal scratch.
    budget = min(vmem_cap // 2, 48 * _MiB)

    def _footprint(tm_, tn_, tk_):
        in_b = 2 * 2 * tk_ * (tm_ + tn_)   # double-buffered bf16 x & w tiles
        out_b = 2 * out_isz * tm_ * tn_    # double-buffered output tile
        acc_b = 4 * tm_ * tn_              # f32 accumulator scratch
        return in_b + out_b + acc_b

    # ---- tile selection -----------------------------------------------------
    # Lane-dense output tile (multiple of 128); prefer tn >= 256 (v6e/v7x MXU
    # is 256 wide). tm is a multiple of 16 (bf16 sublanes). No forced M split:
    # on 1-TC chips the grid is a serial loop and tiny tm just drains the MXU.
    tm = min(tm_pref, _round_up(M, _SUBLANE_BF16))
    tn = min(tn_pref, _round_up(N, _LANE))

    if _footprint(tm, tn, K) <= budget:
        tk = K
    else:
        tk = 1024  # power-of-two multiple of 128 -> stays 128-aligned when halved
        while _footprint(tm, tn, tk) > budget:
            if tk > _LANE:
                tk //= 2                    # shrink the reduction tile first
            elif tm > 256:
                tm //= 2                    # then rows, keeping tn >= 256
            elif tn > 256:
                tn //= 2
            elif tm > _SUBLANE_BF16:
                tm = max(_SUBLANE_BF16,
                         (tm // 2) // _SUBLANE_BF16 * _SUBLANE_BF16)
            elif tn > _LANE:
                tn //= 2
            else:
                break                       # smallest legal tiles; rely on vmem_limit
        if tk >= K:
            tk = K                          # tm/tn shrank enough: no K tiling needed
        else:
            # Prefer a tk that divides K so the contraction dim needs no padding.
            for cand in range(tk, _LANE - 1, -_LANE):
                if K % cand == 0:
                    tk = cand
                    break

    k_pad = _round_up(K, tk)
    n_pad = _round_up(N, tn)
    m_tiles = pl.cdiv(M, tm)
    n_tiles = n_pad // tn
    k_tiles = k_pad // tk

    # ---- operand prep -------------------------------------------------------
    # bf16 MXU math; weight stays in (N, K) layout, so no transpose is ever
    # materialized.  K is only zero-padded in the (rare) K-tiled, non-divisible
    # case (zeros do not affect the dot product).
    # TODO(synk): in a real model, cast/pad the weight to bf16 once at load
    # time and reuse it across forward calls instead of converting per call.
    x_bf = x2d.astype(jnp.bfloat16)
    if k_pad != K:
        x_bf = jnp.pad(x_bf, ((0, 0), (0, k_pad - K)))
    w_bf = weight.astype(jnp.bfloat16)
    if n_pad != N or k_pad != K:
        w_bf = jnp.pad(w_bf, ((0, n_pad - N), (0, k_pad - K)))

    # ---- grid-order selection: keep the re-streamed operand small -----------
    x_elems = m_tiles * tm * k_pad
    w_elems = n_pad * k_pad

    def _stream_elems(outer_tiles, inner_tiles, outer_elems, inner_elems):
        outer_passes = inner_tiles if k_tiles > 1 else 1
        inner_passes = outer_tiles if (inner_tiles > 1 or k_tiles > 1) else 1
        return outer_passes * outer_elems + inner_passes * inner_elems

    cost_mn = _stream_elems(m_tiles, n_tiles, x_elems, w_elems)
    cost_nm = _stream_elems(n_tiles, m_tiles, w_elems, x_elems)
    order_mn = cost_mn <= cost_nm
    stream_elems = min(cost_mn, cost_nm)

    # ---- grid / specs -------------------------------------------------------
    if k_tiles == 1:
        kernel = _linear_kernel
        scratch = []
        dims = ("parallel", "parallel")
        if order_mn:
            grid = (m_tiles, n_tiles)
            x_spec = pl.BlockSpec((tm, k_pad), lambda i, j: (i, 0))
            w_spec = pl.BlockSpec((tn, k_pad), lambda i, j: (j, 0))
            o_spec = pl.BlockSpec((tm, tn), lambda i, j: (i, j))
        else:
            grid = (n_tiles, m_tiles)
            x_spec = pl.BlockSpec((tm, k_pad), lambda j, i: (i, 0))
            w_spec = pl.BlockSpec((tn, k_pad), lambda j, i: (j, 0))
            o_spec = pl.BlockSpec((tm, tn), lambda j, i: (i, j))
    else:
        kernel = _linear_kernel_ktiled
        scratch = [pltpu.VMEM((tm, tn), jnp.float32)]
        dims = ("parallel", "parallel", "arbitrary")
        if order_mn:
            grid = (m_tiles, n_tiles, k_tiles)
            x_spec = pl.BlockSpec((tm, tk), lambda i, j, k: (i, k))
            w_spec = pl.BlockSpec((tn, tk), lambda i, j, k: (j, k))
            o_spec = pl.BlockSpec((tm, tn), lambda i, j, k: (i, j))
        else:
            grid = (n_tiles, m_tiles, k_tiles)
            x_spec = pl.BlockSpec((tm, tk), lambda j, i, k: (i, k))
            w_spec = pl.BlockSpec((tn, tk), lambda j, i, k: (j, k))
            o_spec = pl.BlockSpec((tm, tn), lambda j, i, k: (i, j))
    # TODO(synk): if a profile shows exposed weight-slab DMA waits when
    # n_tiles > 1, add pipeline_mode=pl.Buffered(3) to w_spec (and account for
    # the extra buffer in _footprint).

    footprint = _footprint(tm, tn, tk)
    vmem_limit = int(min(max(2 * footprint, 32 * _MiB), vmem_cap - 4 * _MiB))
    vmem_limit = max(vmem_limit, footprint + 4 * _MiB)

    cost = pl.CostEstimate(
        flops=2 * m_tiles * tm * k_pad * n_pad,
        transcendentals=0,
        bytes_accessed=2 * stream_elems + out_isz * m_tiles * tm * n_pad,
    )

    out2d = pl.pallas_call(
        kernel,
        out_shape=jax.ShapeDtypeStruct((M, n_pad), out_dtype),
        grid_spec=pltpu.PrefetchScalarGridSpec(
            num_scalar_prefetch=0,
            grid=grid,
            in_specs=[x_spec, w_spec],
            out_specs=o_spec,
            scratch_shapes=scratch,
        ),
        compiler_params=pltpu.CompilerParams(
            dimension_semantics=dims,
            vmem_limit_bytes=vmem_limit,
        ),
        cost_estimate=cost,
    )(x_bf, w_bf)

    return out2d[:, :N].reshape(*lead, N)


if __name__ == "__main__":
    # Small shapes consistent with the module's forward:
    # X: (batch=2, seq=8, n_features=32) -> Y: (2, 8, d_embedding=64)
    n_features = 32
    d_embedding = 64

    key = jax.random.PRNGKey(0)
    kx, kw = jax.random.split(key)

    x = jax.random.normal(kx, (2, 8, n_features), dtype=jnp.float32)
    # PyTorch Linear weight layout: (out_features, in_features).
    weight = jax.random.normal(kw, (d_embedding, n_features), dtype=jnp.float32) * (
        1.0 / jnp.sqrt(n_features)
    )

    fwd = jax.jit(linear_embedding)
    y = fwd(x, weight)
    jax.block_until_ready(y)

    # Reference (same math as torch.nn.Linear without bias); loose tolerance
    # because the kernel runs the matmul in bf16 (f32 accumulation).
    y_ref = jnp.einsum("bsf,ef->bse", x, weight)
    assert y.shape == (2, 8, d_embedding)
    assert y.dtype == x.dtype
    assert jnp.allclose(y, y_ref, atol=5e-2, rtol=5e-2)

    print("KERNEL_OK")
</pallas_src>

<mosaic_0001>
module attributes {stable_mosaic.version = 11 : i64} {
  func.func @_linear_kernel(%arg0: i32, %arg1: i32, %arg2: memref<16x32xbf16, #tpu.memory_space<vmem>>, %arg3: memref<128x32xbf16, #tpu.memory_space<vmem>>, %arg4: memref<16x128xf32, #tpu.memory_space<vmem>>) attributes {dimension_semantics = [#tpu.dimension_semantics<parallel>, #tpu.dimension_semantics<parallel>], iteration_bounds = array<i64: 1, 1>, scalar_prefetch = 0 : i64, scratch_operands = 0 : i64, tpu.core_type = #tpu.core_type<tc>, window_params = [{transform_indices = @transform_0, window_bounds = array<i64: 16, 32>}, {transform_indices = @transform_1, window_bounds = array<i64: 128, 32>}, {transform_indices = @transform_2, window_bounds = array<i64: 16, 128>}]} {
    %c0 = arith.constant 0 : index
    %c0_0 = arith.constant 0 : index
    %0 = vector.load %arg2[%c0, %c0_0] : memref<16x32xbf16, #tpu.memory_space<vmem>>, vector<16x32xbf16>
    %c0_1 = arith.constant 0 : index
    %c0_2 = arith.constant 0 : index
    %1 = vector.load %arg3[%c0_1, %c0_2] : memref<128x32xbf16, #tpu.memory_space<vmem>>, vector<128x32xbf16>
    %cst = arith.constant dense<0.000000e+00> : vector<16x128xf32>
    %2 = tpu.matmul %0, %1, %cst {dimension_numbers = #tpu.dot_dimension_numbers<[1], [1], [0], [0], [0, 0, 1, 0], [], []>} : vector<16x32xbf16>, vector<128x32xbf16>, vector<16x128xf32> -> vector<16x128xf32>
    %c0_3 = arith.constant 0 : index
    %c0_4 = arith.constant 0 : index
    %3 = vector.load %arg4[%c0_3, %c0_4] : memref<16x128xf32, #tpu.memory_space<vmem>>, vector<16x128xf32>
    tpu.vector_store %arg4[%c0_3, %c0_4], %2 {strides = array<i32>} : memref<16x128xf32, #tpu.memory_space<vmem>>, vector<16x128xf32>,
    return
  }
  func.func @transform_0(%arg0: i32, %arg1: i32) -> (i32, i32) {
    %c0_i32 = arith.constant 0 : i32
    %c0_i32_0 = arith.constant 0 : i32
    return %arg0, %c0_i32 : i32, i32
  }
  func.func @transform_1(%arg0: i32, %arg1: i32) -> (i32, i32) {
    %c0_i32 = arith.constant 0 : i32
    %c0_i32_0 = arith.constant 0 : i32
    return %arg1, %c0_i32 : i32, i32
  }
  func.func @transform_2(%arg0: i32, %arg1: i32) -> (i32, i32) {
    %c0_i32 = arith.constant 0 : i32
    return %arg0, %arg1 : i32, i32
  }
}

</mosaic_0001>

<llo_original>
// kernel: linear_embedding.1
$region0: #{linear_embedding.1}
  #allocation0 [shape = 'u32[]', space=smem, size = 0x4, offset = 0x4, fixed_abs, tag = 'smem constant byte address 0x4 - core index']
  #allocation1 [shape = 'u32[144,128]{1,0:T(1,128)}', space=vmem, size = 0x12000, scoped, tag = 'internal scratch']
  %s0 = inlined_call_operand.vmem [shape: bf16[16,32], index: 0, kind: input, shape index: {}]
  %s1 = inlined_call_operand.vmem [shape: bf16[128,32], index: 1, kind: input, shape index: {}]
  %s2 = inlined_call_operand.vmem [shape: f32[16,128], index: 2, kind: output, shape index: {}]
  %s3 = sld [smem:[#allocation0]]
  $region18: #{linear_embedding.1} parent=0
    _
  %s5 = ssub.s32 1, %s3
  %s6 = scalar_select 0, %s5, %s3
  // Predicated region
  $region2: #{linear_embedding.1} parent=0 // pred_check
    _
  $region3: #{linear_embedding.1} parent=0 // pred_check_branch
    %8 = sbr.rel (0) target = $region5
  $region4: #{linear_embedding.1} parent=0 // pred_region
    _
  $region5: #{linear_embedding.1} parent=0 // pred_fallthru
    _
  // Predicated region
  $region6: #{linear_embedding.1} parent=0 // pred_check
    _
  $region7: #{linear_embedding.1} parent=0 // pred_check_branch
    %10 = sbr.rel (0) target = $region9
  $region8: #{linear_embedding.1} parent=0 // pred_region
    _
  $region9: #{linear_embedding.1} parent=0 // pred_fallthru
    _
  %v12 = vld [vmem:[%s0] sm:$0xf]
  %v13 = vld [vmem:[%s0 + $0x4] sm:$0xf]
  %v14 = vld [vmem:[%s1] sm:$0xf]
  %v15 = vld [vmem:[%s1 + $0x4] sm:$0xf]
  %v16 = vld [vmem:[%s1 + $0x8] sm:$0xf]
  %v17 = vld [vmem:[%s1 + $0xc] sm:$0xf]
  %v18 = vld [vmem:[%s1 + $0x10] sm:$0xf]
  %v19 = vld [vmem:[%s1 + $0x14] sm:$0xf]
  %v20 = vld [vmem:[%s1 + $0x18] sm:$0xf]
  %v21 = vld [vmem:[%s1 + $0x1c] sm:$0xf]
  %v22 = vld [vmem:[%s1 + $0x20] sm:$0xf]
  %v23 = vld [vmem:[%s1 + $0x24] sm:$0xf]
  %v24 = vld [vmem:[%s1 + $0x28] sm:$0xf]
  %v25 = vld [vmem:[%s1 + $0x2c] sm:$0xf]
  %v26 = vld [vmem:[%s1 + $0x30] sm:$0xf]
  %v27 = vld [vmem:[%s1 + $0x34] sm:$0xf]
  %v28 = vld [vmem:[%s1 + $0x38] sm:$0xf]
  %v29 = vld [vmem:[%s1 + $0x3c] sm:$0xf]
  %v32 = vunpack.c.l.b16 %v12
  %v33 = vunpack.c.l.b16 %v13
  %v34 = vpack.c.b16 %v33, %v32
  %v51 = vunpack.c.l.b16 %v14
  %v52 = vunpack.c.l.b16 %v15
  %v53 = vunpack.c.l.b16 %v16
  %v54 = vunpack.c.l.b16 %v17
  %v55 = vunpack.c.l.b16 %v18
  %v56 = vunpack.c.l.b16 %v19
  %v57 = vunpack.c.l.b16 %v20
  %v58 = vunpack.c.l.b16 %v21
  %v59 = vunpack.c.l.b16 %v22
  %v60 = vunpack.c.l.b16 %v23
  %v61 = vunpack.c.l.b16 %v24
  %v62 = vunpack.c.l.b16 %v25
  %v63 = vunpack.c.l.b16 %v26
  %v64 = vunpack.c.l.b16 %v27
  %v65 = vunpack.c.l.b16 %v28
  %v66 = vunpack.c.l.b16 %v29
  %v67 = vpack.c.b16 %v52, %v51
  %v68 = vpack.c.b16 %v54, %v53
  %v69 = vpack.c.b16 %v56, %v55
  %v70 = vpack.c.b16 %v58, %v57
  %v71 = vpack.c.b16 %v60, %v59
  %v72 = vpack.c.b16 %v62, %v61
  %v73 = vpack.c.b16 %v64, %v63
  %v74 = vpack.c.b16 %v66, %v65
  %vm75 = vcmask 261120
  %v77 = vsel %vm75, %v34, 0
  %v80 = vsel %vm75, %v67, 0
  %v83 = vsel %vm75, %v68, 0
  %v86 = vsel %vm75, %v69, 0
  %v89 = vsel %vm75, %v70, 0
  %v92 = vsel %vm75, %v71, 0
  %v95 = vsel %vm75, %v72, 0
  %v98 = vsel %vm75, %v73, 0
  %v101 = vsel %vm75, %v74, 0
  %103 = vmatprep.subr.bf16.mxu0 0
  %104 = vmatpush1.bf16.xpose.msra.mxu0 %v101
  %105 = vmatprep.subr.bf16.mxu0 0
  %106 = vmatpush1.bf16.xpose.msra.mxu0 %v98
  %107 = vmatprep.subr.bf16.mxu0 0
  %108 = vmatpush1.bf16.xpose.msra.mxu0 %v95
  %109 = vmatprep.subr.bf16.mxu0 0
  %110 = vmatpush1.bf16.xpose.msra.mxu0 %v92
  %111 = vmatprep.subr.bf16.mxu0 0
  %112 = vmatpush1.bf16.xpose.msra.mxu0 %v89
  %113 = vmatprep.subr.bf16.mxu0 0
  %114 = vmatpush1.bf16.xpose.msra.mxu0 %v86
  %115 = vmatprep.subr.bf16.mxu0 0
  %116 = vmatpush1.bf16.xpose.msra.mxu0 %v83
  %117 = vmatprep.subr.bf16.mxu0 0
  %118 = vmatpush1.bf16.xpose.msra.mxu0 %v80
  %119 = vmatprep.subr.bf16.mxu0 0
  %120 = vmatpush2.bf16.xpose.msra.mxu0 0
  %121 = vmatprep.subr.bf16.mxu0 0
  %122 = vmatpush2.bf16.xpose.msra.mxu0 0
  %123 = vmatprep.subr.bf16.mxu0 0
  %124 = vmatpush2.bf16.xpose.msra.mxu0 0
  %125 = vmatprep.subr.bf16.mxu0 0
  %126 = vmatpush2.bf16.xpose.msra.mxu0 0
  %127 = vmatprep.subr.bf16.mxu0 0
  %128 = vmatpush2.bf16.xpose.msra.mxu0 0
  %129 = vmatprep.subr.bf16.mxu0 0
  %130 = vmatpush2.bf16.xpose.msra.mxu0 0
  %131 = vmatprep.subr.bf16.mxu0 0
  %132 = vmatpush2.bf16.xpose.msra.mxu0 0
  %133 = vmatprep.subr.bf16.mxu0 0
  %134 = vmatpush2.bf16.xpose.msra.mxu0 0
  %135 = vmatprep.mubr.bf16.mxu0 0
  %136 = vmatmul.mubr.bf16.gmra.mxu0 %v77
  %v137 = vpop.f32.mrf.mxu0
  %v138 = vadd.f32 0.0, %v137
  %v139 = vpop.f32.mrf.mxu0
  %v140 = vpop.f32.mrf.mxu0
  %v141 = vadd.f32 0.0, %v140
  %v142 = vpop.f32.mrf.mxu0
  %143 = vdwg.mxu0
  %144 = vst [vmem:[%s2] sm:$0xff] %v138
  %145 = vst [vmem:[%s2 + $0x8] sm:$0xff] %v141
  // Predicated region
  $region10: #{linear_embedding.1} parent=0 // pred_check
    _
  $region11: #{linear_embedding.1} parent=0 // pred_check_branch
    %147 = sbr.rel (0) target = $region13
  $region12: #{linear_embedding.1} parent=0 // pred_region
    _
  $region13: #{linear_embedding.1} parent=0 // pred_fallthru
    _
  // Predicated region
  $region14: #{linear_embedding.1} parent=0 // pred_check
    _
  $region15: #{linear_embedding.1} parent=0 // pred_check_branch
    %149 = sbr.rel (0) target = $region17
  $region16: #{linear_embedding.1} parent=0 // pred_region
    _
  $region17: #{linear_embedding.1} parent=0 // pred_fallthru
    _

</llo_original>
